<compile_context>
chip_gen: v6e
topology: v6e:2x2x1
jax: 0.10.0
libtpu: 0.0.40
codegen_flags: <defaults>
</compile_context>

<pallas_src>
import jax
import jax.numpy as jnp
from jax.experimental import pallas as pl
from jax.experimental.pallas import tpu as pltpu


# --------------------------- helpers ---------------------------

def _round_up(x, m):
    return ((x + m - 1) // m) * m


def _cdiv(a, b):
    return (a + b - 1) // b


def _sublane_unit(dtype):
    # minimum sublane tile: 8 for 4-byte, 16 for 2-byte, 32 for 1-byte dtypes
    return max(8, 32 // jnp.dtype(dtype).itemsize)


def _vmem_caps():
    """Returns (vmem_limit_bytes to request, byte budget our tiles may use)."""
    phys = 0
    try:
        phys = int(pltpu.get_tpu_info().vmem_capacity_bytes)
    except Exception:
        phys = 0
    if phys <= 0:
        phys = 64 << 20           # conservative default (v7x per-TC VMEM)
    limit = max(32 << 20, (phys * 3) // 4)   # leave compiler headroom
    budget = (limit * 7) // 8                # what our buffers may consume
    return limit, budget


# --------------------------- kernels ---------------------------

def _shared_fullk_kernel(x_ref, w_ref, b_ref, o_ref):
    # x_ref: (tm, nf); w_ref: (nf, tw) resident; b_ref: (1, tw); o_ref: (tm, tw)
    z = jnp.dot(x_ref[...], w_ref[...], preferred_element_type=jnp.float32)
    o_ref[...] = (z + b_ref[...].astype(jnp.float32)).astype(o_ref.dtype)


def _shared_ktiled_kernel(x_ref, w_ref, b_ref, o_ref, acc_ref):
    # Fallback path when nf is too large to keep resident.
    # x_ref: (tm, tk); w_ref: (tk, tw); b_ref: (1, tw); o/acc: (tm, tw)
    @pl.when(pl.program_id(1) == 0)
    def _init():
        acc_ref[...] = jnp.zeros_like(acc_ref)

    acc_ref[...] += jnp.dot(x_ref[...], w_ref[...],
                            preferred_element_type=jnp.float32)

    @pl.when(pl.program_id(1) == pl.num_programs(1) - 1)
    def _finalize():
        # bias added exactly once, after the full K reduction
        o_ref[...] = (acc_ref[...] + b_ref[...].astype(jnp.float32)).astype(o_ref.dtype)


def _individual_kernel(x_ref, w_ref, b_ref, o_ref):
    # x_ref: (tb, nf) or (1, tb, nf); w_ref: (1, nf, tw); b_ref: (1, 1, tw)
    # o_ref: (1, tb, tw)
    xv = x_ref[...]
    xv = xv.reshape(xv.shape[-2], xv.shape[-1])           # squeeze leading 1 (free)
    z = jnp.dot(xv, w_ref[0], preferred_element_type=jnp.float32)   # (tb, tw)
    o_ref[0] = (z + b_ref[0].astype(jnp.float32)).astype(o_ref.dtype)


# --------------------------- wrappers ---------------------------

def flatten_head_shared(x, weight, bias, *, tm=None, tk=None):
    """individual=False path.
    x: [B, n_vars, d_model, patch_num]; weight: [tw, nf] (PyTorch layout); bias: [tw]."""
    B, n_vars, d_model, patch_num = x.shape
    nf = d_model * patch_num
    tw = weight.shape[0]
    assert weight.shape == (tw, nf) and bias.shape == (tw,)

    M = B * n_vars
    x2 = x.reshape(M, nf)            # Flatten(start_dim=-2) + merged batch dims (view)
    w_t = weight.T                   # one-time tiny HBM transpose -> (nf, tw)
    b2 = bias.reshape(1, tw)

    xb = x2.dtype.itemsize
    wb = w_t.dtype.itemsize
    ob = x.dtype.itemsize
    unit = _sublane_unit(x2.dtype)
    vmem_limit, budget = _vmem_caps()

    # ---- K tiling: keep the whole (nf, tw) weight resident whenever it fits ----
    if tk is None:
        need_full_k = 2 * unit * nf * xb + 2 * nf * tw * wb + 2 * unit * tw * ob
        if need_full_k <= budget:
            tk = nf                  # full-K: no accumulator, no K grid axis
        else:
            per_k = 2 * unit * xb + 2 * tw * wb
            tk = max(128, (((budget // 2) // max(per_k, 1)) // 128) * 128)
            tk = min(tk, _round_up(nf, 128))
    full_k = tk >= nf

    # ---- M tile: as big as the VMEM budget allows, but >= 4 blocks for megacore ----
    if tm is None:
        fixed = 2 * tk * tw * wb + (8 << 10)
        per_row = 2 * tk * xb + 2 * tw * ob + (0 if full_k else 4 * tw)
        rows = max(unit, (budget - fixed) // max(per_row, 1))
        tm = min(1024, rows, _round_up(M, unit))
        tm = max(unit, tm - tm % unit)
        if _cdiv(M, tm) < 4 and M >= 4 * unit:
            tm = max(unit, _round_up(_cdiv(M, 4), unit))

    Mg = _round_up(M, tm)
    Kg = nf if full_k else _round_up(nf, tk)
    if Mg != M or Kg != nf:
        x2 = jnp.pad(x2, ((0, Mg - M), (0, Kg - nf)))
    if Kg != nf:
        w_t = jnp.pad(w_t, ((0, Kg - nf), (0, 0)))

    if full_k:
        out = pl.pallas_call(
            _shared_fullk_kernel,
            out_shape=jax.ShapeDtypeStruct((Mg, tw), x.dtype),
            grid_spec=pltpu.PrefetchScalarGridSpec(
                num_scalar_prefetch=0,
                grid=(Mg // tm,),
                in_specs=[
                    pl.BlockSpec((tm, Kg), lambda i: (i, 0)),      # streamed x tile
                    pl.BlockSpec((Kg, tw), lambda i: (0, 0)),      # resident weight
                    pl.BlockSpec((1, tw), lambda i: (0, 0)),       # resident bias
                ],
                out_specs=pl.BlockSpec((tm, tw), lambda i: (i, 0)),
            ),
            compiler_params=pltpu.CompilerParams(
                dimension_semantics=("parallel",),
                vmem_limit_bytes=vmem_limit),
        )(x2, w_t, b2)
    else:
        out = pl.pallas_call(
            _shared_ktiled_kernel,
            out_shape=jax.ShapeDtypeStruct((Mg, tw), x.dtype),
            grid_spec=pltpu.PrefetchScalarGridSpec(
                num_scalar_prefetch=0,
                grid=(Mg // tm, Kg // tk),
                in_specs=[
                    pl.BlockSpec((tm, tk), lambda i, k: (i, k)),
                    pl.BlockSpec((tk, tw), lambda i, k: (k, 0)),
                    pl.BlockSpec((1, tw), lambda i, k: (0, 0)),
                ],
                out_specs=pl.BlockSpec((tm, tw), lambda i, k: (i, 0)),
                scratch_shapes=[pltpu.VMEM((tm, tw), jnp.float32)],
            ),
            compiler_params=pltpu.CompilerParams(
                dimension_semantics=("parallel", "arbitrary"),
                vmem_limit_bytes=vmem_limit),
        )(x2, w_t, b2)

    if Mg != M:
        out = out[:M]
    return out.reshape(B, n_vars, tw)


def flatten_head_individual(x, weights, biases, *, tb=None):
    """individual=True path (per-variable Linear).
    x: [B, n_vars, d_model, patch_num]; weights: [n_vars, tw, nf] (PyTorch layout);
    biases: [n_vars, tw]."""
    B, n_vars, d_model, patch_num = x.shape
    nf = d_model * patch_num
    tw = weights.shape[1]
    assert weights.shape == (n_vars, tw, nf) and biases.shape == (n_vars, tw)

    w_t = weights.transpose(0, 2, 1)     # (n_vars, nf, tw): one-time small transpose
    b3 = biases.reshape(n_vars, 1, tw)

    xb = x.dtype.itemsize
    wb = w_t.dtype.itemsize
    ob = x.dtype.itemsize
    unit = _sublane_unit(x.dtype)
    vmem_limit, budget = _vmem_caps()

    if tb is None:
        fixed = 2 * nf * tw * wb + (8 << 10)          # one variable's weight per step
        per_row = 2 * nf * xb + 2 * tw * ob
        rows = max(unit, (budget - fixed) // max(per_row, 1))
        tb = min(1024, rows, _round_up(B, unit))
        tb = max(unit, tb - tb % unit)
        # the n_vars grid axis already provides megacore parallelism; only
        # shrink batch tiles when there is a single variable
        if n_vars == 1 and _cdiv(B, tb) < 4 and B >= 4 * unit:
            tb = max(unit, _round_up(_cdiv(B, 4), unit))

    Bg = _round_up(B, tb)

    if nf % 128 == 0:
        # zero-copy view: variable v occupies lanes [v*nf, (v+1)*nf)
        x_in = x.reshape(B, n_vars * nf)
        if Bg != B:
            x_in = jnp.pad(x_in, ((0, Bg - B), (0, 0)))
        x_spec = pl.BlockSpec((tb, nf), lambda v, b: (b, v))
    else:
        # nf not lane-aligned: one-time var-major transpose keeps every block
        # full-width in the lane dim
        x_in = x.reshape(B, n_vars, nf).transpose(1, 0, 2)   # (n_vars, B, nf)
        if Bg != B:
            x_in = jnp.pad(x_in, ((0, 0), (0, Bg - B), (0, 0)))
        x_spec = pl.BlockSpec((1, tb, nf), lambda v, b: (v, b, 0))

    out = pl.pallas_call(
        _individual_kernel,
        out_shape=jax.ShapeDtypeStruct((n_vars, Bg, tw), x.dtype),
        grid_spec=pltpu.PrefetchScalarGridSpec(
            num_scalar_prefetch=0,
            # batch innermost: weight for variable v is fetched once and reused
            grid=(n_vars, Bg // tb),
            in_specs=[
                x_spec,
                pl.BlockSpec((1, nf, tw), lambda v, b: (v, 0, 0)),  # per-var weight
                pl.BlockSpec((1, 1, tw), lambda v, b: (v, 0, 0)),   # per-var bias
            ],
            out_specs=pl.BlockSpec((1, tb, tw), lambda v, b: (v, b, 0)),
        ),
        compiler_params=pltpu.CompilerParams(
            dimension_semantics=("parallel", "parallel"),
            vmem_limit_bytes=vmem_limit),
    )(x_in, w_t, b3)

    if Bg != B:
        out = out[:, :B]
    return out.transpose(1, 0, 2)        # tiny (B, n_vars, tw) output transpose


# --------------------------- driver ---------------------------

if __name__ == "__main__":
    key = jax.random.PRNGKey(0)
    ks = jax.random.split(key, 8)

    # ---- config A: nf multiple of 128 (lane-packed individual path) ----
    B, n_vars, d_model, patch_num = 2, 16, 16, 16
    nf = d_model * patch_num          # 256
    target_window = 24

    x = jax.random.normal(ks[0], (B, n_vars, d_model, patch_num), dtype=jnp.float32)
    bound = 1.0 / (nf ** 0.5)
    w_shared = jax.random.uniform(ks[1], (target_window, nf), minval=-bound, maxval=bound,
                                  dtype=jnp.float32)
    b_shared = jax.random.uniform(ks[2], (target_window,), minval=-bound, maxval=bound,
                                  dtype=jnp.float32)
    w_indiv = jax.random.uniform(ks[3], (n_vars, target_window, nf), minval=-bound,
                                 maxval=bound, dtype=jnp.float32)
    b_indiv = jax.random.uniform(ks[4], (n_vars, target_window), minval=-bound,
                                 maxval=bound, dtype=jnp.float32)

    x_flat = x.reshape(B, n_vars, nf)
    ref_shared = jnp.einsum("bvf,tf->bvt", x_flat, w_shared) + b_shared
    ref_indiv = jnp.einsum("bvf,vtf->bvt", x_flat, w_indiv) + b_indiv[None]

    # shared: auto tiles (full-K, resident-weight path)
    out_s = jax.block_until_ready(flatten_head_shared(x, w_shared, b_shared))
    assert out_s.shape == (B, n_vars, target_window)
    assert jnp.allclose(out_s, ref_shared, atol=1e-4, rtol=1e-4)

    # shared: forced K-tiled accumulator fallback (exercises init/finalize)
    out_s2 = jax.block_until_ready(
        flatten_head_shared(x, w_shared, b_shared, tm=8, tk=128))
    assert jnp.allclose(out_s2, ref_shared, atol=1e-4, rtol=1e-4)

    # shared: bf16 storage of x / w (halves the dominant HBM read; loose check)
    out_s3 = jax.block_until_ready(
        flatten_head_shared(x.astype(jnp.bfloat16), w_shared.astype(jnp.bfloat16), b_shared))
    assert jnp.allclose(out_s3.astype(jnp.float32), ref_shared, atol=1e-1, rtol=1e-1)

    # individual: lane-packed (nf % 128 == 0) path, grid over (vars, batch tiles)
    out_i = jax.block_until_ready(flatten_head_individual(x, w_indiv, b_indiv))
    assert out_i.shape == (B, n_vars, target_window)
    assert jnp.allclose(out_i, ref_indiv, atol=1e-4, rtol=1e-4)

    # ---- config B: ragged shapes (M not multiple of 8, nf not multiple of 128) ----
    B2, n_vars2, d_model2, patch_num2, tw2 = 3, 5, 12, 10, 10
    nf2 = d_model2 * patch_num2       # 120
    x_b = jax.random.normal(ks[5], (B2, n_vars2, d_model2, patch_num2), dtype=jnp.float32)
    w_s2 = jax.random.uniform(ks[6], (tw2, nf2), minval=-0.1, maxval=0.1, dtype=jnp.float32)
    b_s2 = jax.random.uniform(ks[7], (tw2,), minval=-0.1, maxval=0.1, dtype=jnp.float32)
    w_i2 = jax.random.uniform(ks[6], (n_vars2, tw2, nf2), minval=-0.1, maxval=0.1,
                              dtype=jnp.float32)
    b_i2 = jax.random.uniform(ks[7], (n_vars2, tw2), minval=-0.1, maxval=0.1,
                              dtype=jnp.float32)

    xf2 = x_b.reshape(B2, n_vars2, nf2)
    ref_s2 = jnp.einsum("bvf,tf->bvt", xf2, w_s2) + b_s2
    ref_i2 = jnp.einsum("bvf,vtf->bvt", xf2, w_i2) + b_i2[None]

    out_s4 = jax.block_until_ready(flatten_head_shared(x_b, w_s2, b_s2))
    assert out_s4.shape == (B2, n_vars2, tw2)
    assert jnp.allclose(out_s4, ref_s2, atol=1e-4, rtol=1e-4)

    out_i2 = jax.block_until_ready(flatten_head_individual(x_b, w_i2, b_i2))
    assert out_i2.shape == (B2, n_vars2, tw2)
    assert jnp.allclose(out_i2, ref_i2, atol=1e-4, rtol=1e-4)

    print("KERNEL_OK")
</pallas_src>

<mosaic_0001>
module attributes {stable_mosaic.version = 11 : i64} {
  func.func @_shared_fullk_kernel(%arg0: i32, %arg1: memref<8x256xf32, #tpu.memory_space<vmem>>, %arg2: memref<256x24xf32, #tpu.memory_space<vmem>>, %arg3: memref<1x24xf32, #tpu.memory_space<vmem>>, %arg4: memref<8x24xf32, #tpu.memory_space<vmem>>) attributes {dimension_semantics = [#tpu.dimension_semantics<parallel>], iteration_bounds = array<i64: 4>, scalar_prefetch = 0 : i64, scratch_operands = 0 : i64, tpu.core_type = #tpu.core_type<tc>, window_params = [{transform_indices = @transform_0, window_bounds = array<i64: 8, 256>}, {pipeline_mode = #tpu.pipeline_mode<synchronous>, transform_indices = @transform_1, window_bounds = array<i64: 256, 24>}, {pipeline_mode = #tpu.pipeline_mode<synchronous>, transform_indices = @transform_2, window_bounds = array<i64: 1, 24>}, {transform_indices = @transform_3, window_bounds = array<i64: 8, 24>}]} {
    %c0 = arith.constant 0 : index
    %c0_0 = arith.constant 0 : index
    %0 = vector.load %arg1[%c0, %c0_0] : memref<8x256xf32, #tpu.memory_space<vmem>>, vector<8x256xf32>
    %c0_1 = arith.constant 0 : index
    %c0_2 = arith.constant 0 : index
    %1 = vector.load %arg2[%c0_1, %c0_2] : memref<256x24xf32, #tpu.memory_space<vmem>>, vector<256x24xf32>
    %cst = arith.constant dense<0.000000e+00> : vector<8x24xf32>
    %2 = tpu.matmul %0, %1, %cst {dimension_numbers = #tpu.dot_dimension_numbers<[1], [0], [0], [1], [0, 0, 1, 1], [], []>} : vector<8x256xf32>, vector<256x24xf32>, vector<8x24xf32> -> vector<8x24xf32>
    %c0_3 = arith.constant 0 : index
    %c0_4 = arith.constant 0 : index
    %3 = vector.load %arg3[%c0_3, %c0_4] : memref<1x24xf32, #tpu.memory_space<vmem>>, vector<1x24xf32>
    %4 = vector.broadcast %3 : vector<1x24xf32> to vector<8x24xf32>
    %5 = arith.addf %2, %4 : vector<8x24xf32>
    %c0_5 = arith.constant 0 : index
    %c0_6 = arith.constant 0 : index
    %6 = vector.load %arg4[%c0_5, %c0_6] : memref<8x24xf32, #tpu.memory_space<vmem>>, vector<8x24xf32>
    tpu.vector_store %arg4[%c0_5, %c0_6], %5 {strides = array<i32>} : memref<8x24xf32, #tpu.memory_space<vmem>>, vector<8x24xf32>,
    return
  }
  func.func @transform_0(%arg0: i32) -> (i32, i32) {
    %c0_i32 = arith.constant 0 : i32
    %c0_i32_0 = arith.constant 0 : i32
    return %arg0, %c0_i32 : i32, i32
  }
  func.func @transform_1(%arg0: i32) -> (i32, i32) {
    %c0_i32 = arith.constant 0 : i32
    %c0_i32_0 = arith.constant 0 : i32
    %c0_i32_1 = arith.constant 0 : i32
    return %c0_i32, %c0_i32_0 : i32, i32
  }
  func.func @transform_2(%arg0: i32) -> (i32, i32) {
    %c0_i32 = arith.constant 0 : i32
    %c0_i32_0 = arith.constant 0 : i32
    %c0_i32_1 = arith.constant 0 : i32
    return %c0_i32, %c0_i32_0 : i32, i32
  }
  func.func @transform_3(%arg0: i32) -> (i32, i32) {
    %c0_i32 = arith.constant 0 : i32
    %c0_i32_0 = arith.constant 0 : i32
    return %arg0, %c0_i32 : i32, i32
  }
}

</mosaic_0001>

<llo_original>
// kernel: tpu_custom_call.1
$region0: #{tpu_custom_call.1}
  #allocation0 [shape = 'u32[]', space=smem, size = 0x4, offset = 0x4, fixed_abs, tag = 'smem constant byte address 0x4 - core index']
  #allocation1 [shape = 'u32[144,128]{1,0:T(1,128)}', space=vmem, size = 0x12000, scoped, tag = 'internal scratch']
  %s0 = inlined_call_operand.vmem [shape: f32[32,256], index: 0, kind: input, shape index: {}]
  %s1 = inlined_call_operand.vmem [shape: f32[256,24], index: 1, kind: input, shape index: {}]
  %s2 = inlined_call_operand.vmem [shape: f32[1,24], index: 2, kind: input, shape index: {}]
  %s3 = inlined_call_operand.vmem [shape: f32[32,24], index: 3, kind: output, shape index: {}]
  %s4 = sld [smem:[#allocation0]]
  $region45: #{tpu_custom_call.1} parent=0
    _
  %s6 = ssub.s32 1, %s4
  %s7 = scalar_select 0, %s6, %s4
  loop: start=0, step=1, limit=6
  $region2: #{tpu_custom_call.1} parent=0 // loop_pre_header
    _
  $region3: #{tpu_custom_call.1} parent=0 // loop_header
    %s9 = sphi 0, %s13
    %p10 = scmp.ge.s32.totalorder %s9, 6
    %s19 = sphi 0, %s21
    %s22 = sphi 0, %s19
    %s23 = sphi 0, %s22
    %s39 = sphi 0, %s23
    %s43 = sphi 0, %s43
    %s45 = sphi 0, %s43
    %s46 = sphi 0, %s45
    %s60 = sphi 0, %s46
    %s64 = sphi 0, %s64
    %s66 = sphi 0, %s64
    %s67 = sphi 0, %s66
    %s81 = sphi 0, %s67
    %s87 = sphi 0, %s89
    %s90 = sphi 0, %s87
    %s91 = sphi 0, %s90
    %s107 = sphi 0, %s91
  $region4: #{tpu_custom_call.1} parent=0 // loop_header_branch
    %12 = sbr.rel (%p10) target = $region8
  $region5: #{tpu_custom_call.1} parent=0 // loop_body
    %s14 = ssub.s32 %s9, 1
    %s15 = ssub.s32 %s9, 2
    %s16 = sadd.s32 %s9, 1
    %s17 = ssub.s32 %s9, %s16
    %p18 = scmp.eq.s32.totalorder %s17, 0
    %s20 = sadd.s32 %s19, 1
    %s21 = scalar_select %p18, %s19, %s20
    %p24 = pneg %p18
    %p25 = scmp.eq.s32.totalorder %s9, 3
    %p26 = por %p24, %p25
    %p27 = scmp.ne.s32.totalorder %s19, %s22
    %p28 = scmp.eq.s32.totalorder %s9, 0
    %p29 = por %p27, %p28
    %p30 = scmp.ne.s32.totalorder %s19, %s22
    %p31 = scmp.eq.s32.totalorder %s14, 3
    %p32 = por %p30, %p31
    %p33 = scmp.ne.s32.totalorder %s22, %s23
    %p34 = scmp.eq.s32.totalorder %s14, 0
    %p35 = por %p33, %p34
    %p36 = scmp.ne.s32.totalorder %s22, %s23
    %p37 = scmp.eq.s32.totalorder %s15, 3
    %p38 = por %p36, %p37
    %p40 = scmp.ne.s32.totalorder %s23, %s39
    %p41 = scmp.eq.s32.totalorder %s15, 0
    %p42 = por %p40, %p41
    %s44 = sadd.s32 %s43, 1
    %p47 = scmp.eq.s32.totalorder %s9, 3
    %p48 = scmp.ne.s32.totalorder %s43, %s45
    %p49 = scmp.eq.s32.totalorder %s9, 0
    %p50 = por %p48, %p49
    %p51 = scmp.ne.s32.totalorder %s43, %s45
    %p52 = scmp.eq.s32.totalorder %s14, 3
    %p53 = por %p51, %p52
    %p54 = scmp.ne.s32.totalorder %s45, %s46
    %p55 = scmp.eq.s32.totalorder %s14, 0
    %p56 = por %p54, %p55
    %p57 = scmp.ne.s32.totalorder %s45, %s46
    %p58 = scmp.eq.s32.totalorder %s15, 3
    %p59 = por %p57, %p58
    %p61 = scmp.ne.s32.totalorder %s46, %s60
    %p62 = scmp.eq.s32.totalorder %s15, 0
    %p63 = por %p61, %p62
    %s65 = sadd.s32 %s64, 1
    %p68 = scmp.eq.s32.totalorder %s9, 3
    %p69 = scmp.ne.s32.totalorder %s64, %s66
    %p70 = scmp.eq.s32.totalorder %s9, 0
    %p71 = por %p69, %p70
    %p72 = scmp.ne.s32.totalorder %s64, %s66
    %p73 = scmp.eq.s32.totalorder %s14, 3
    %p74 = por %p72, %p73
    %p75 = scmp.ne.s32.totalorder %s66, %s67
    %p76 = scmp.eq.s32.totalorder %s14, 0
    %p77 = por %p75, %p76
    %p78 = scmp.ne.s32.totalorder %s66, %s67
    %p79 = scmp.eq.s32.totalorder %s15, 3
    %p80 = por %p78, %p79
    %p82 = scmp.ne.s32.totalorder %s67, %s81
    %p83 = scmp.eq.s32.totalorder %s15, 0
    %p84 = por %p82, %p83
    %s85 = ssub.s32 %s9, %s16
    %p86 = scmp.eq.s32.totalorder %s85, 0
    %s88 = sadd.s32 %s87, 1
    %s89 = scalar_select %p86, %s87, %s88
    %p92 = pneg %p86
    %p93 = scmp.eq.s32.totalorder %s9, 3
    %p94 = por %p92, %p93
    %p95 = scmp.ne.s32.totalorder %s87, %s90
    %p96 = scmp.eq.s32.totalorder %s9, 0
    %p97 = por %p95, %p96
    %p98 = scmp.ne.s32.totalorder %s87, %s90
    %p99 = scmp.eq.s32.totalorder %s14, 3
    %p100 = por %p98, %p99
    %p101 = scmp.ne.s32.totalorder %s90, %s91
    %p102 = scmp.eq.s32.totalorder %s14, 0
    %p103 = por %p101, %p102
    %p104 = scmp.ne.s32.totalorder %s90, %s91
    %p105 = scmp.eq.s32.totalorder %s15, 3
    %p106 = por %p104, %p105
    %p108 = scmp.ne.s32.totalorder %s91, %s107
    %p109 = scmp.eq.s32.totalorder %s15, 0
    %p110 = por %p108, %p109
    %p111 = scmp.le.s32.totalorder 1, %s9
    %p112 = scmp.lt.s32.totalorder %s9, 5
    %p113 = pnand %p111, %p112
    %p114 = pneg %p113
    // Predicated region
    $region9: #{tpu_custom_call.1} parent=5 // pred_check
      _
    $region10: #{tpu_custom_call.1} parent=5 // pred_check_branch
      %116 = sbr.rel (%p113) target = $region12
    $region11: #{tpu_custom_call.1} parent=5 // pred_region
      %s117 = ssub.s32 %s9, 1
      // Predicated region
      $region13: #{tpu_custom_call.1} parent=11 // pred_check
        %p118 = pneg %p56
      $region14: #{tpu_custom_call.1} parent=11 // pred_check_branch
        %120 = sbr.rel (%p118) target = $region16
      $region15: #{tpu_custom_call.1} parent=11 // pred_region
        _
      $region16: #{tpu_custom_call.1} parent=11 // pred_fallthru
        _
      // Predicated region
      $region17: #{tpu_custom_call.1} parent=11 // pred_check
        %p121 = pneg %p77
      $region18: #{tpu_custom_call.1} parent=11 // pred_check_branch
        %123 = sbr.rel (%p121) target = $region20
      $region19: #{tpu_custom_call.1} parent=11 // pred_region
        _
      $region20: #{tpu_custom_call.1} parent=11 // pred_fallthru
        _
    $region12: #{tpu_custom_call.1} parent=5 // pred_fallthru
      _
    %p124 = scmp.lt.s32.totalorder %s9, 4
    // Predicated region
    $region21: #{tpu_custom_call.1} parent=5 // pred_check
      %p125 = pneg %p124
    $region22: #{tpu_custom_call.1} parent=5 // pred_check_branch
      %127 = sbr.rel (%p125) target = $region24
    $region23: #{tpu_custom_call.1} parent=5 // pred_region
      // Predicated region
      $region25: #{tpu_custom_call.1} parent=23 // pred_check
        %p128 = pneg %p29
      $region26: #{tpu_custom_call.1} parent=23 // pred_check_branch
        %130 = sbr.rel (%p128) target = $region28
      $region27: #{tpu_custom_call.1} parent=23 // pred_region
        %p131 = scmp.lt.s32.totalorder %s9, 3
        %s132 = scalar_select %p131, %s9, 3
        %s133 = smul.addr %s132, 2
        %s134 = smul.addr %s133, 8
        %s135 = scalar_lea.vmem %s0, %s134
      $region28: #{tpu_custom_call.1} parent=23 // pred_fallthru
        _
    $region24: #{tpu_custom_call.1} parent=5 // pred_fallthru
      _
    %p136 = scmp.le.s32.totalorder 1, %s9
    %p137 = scmp.lt.s32.totalorder %s9, 5
    %p138 = pnand %p136, %p137
    %p139 = pneg %p138
    // Predicated region
    $region29: #{tpu_custom_call.1} parent=5 // pred_check
      _
    $region30: #{tpu_custom_call.1} parent=5 // pred_check_branch
      %141 = sbr.rel (%p138) target = $region32
    $region31: #{tpu_custom_call.1} parent=5 // pred_region
      %s142 = ssub.s32 %s9, 1
      %p143 = scmp.lt.s32.totalorder %s14, 3
      %s144 = scalar_select %p143, %s14, 3
      %s145 = smul.addr %s144, 2
      %s146 = smul.addr %s145, 8
      %s147 = scalar_lea.vmem %s0, %s146
      %p148 = pneg %p35
      %p149 = pneg %p32
      %p150 = pneg %p56
      %p151 = pneg %p53
      %p152 = pneg %p77
      %p153 = pneg %p74
      %p154 = pneg %p103
      %p155 = pneg %p100
      %p156 = scmp.lt.s32.totalorder %s14, 3
      %s157 = scalar_select %p156, %s14, 3
      %s158 = smul.addr %s157, 8
      %s159 = scalar_lea.vmem %s3, %s158
      %p160 = scmp.lt.s32.totalorder %s14, 3
      %s161 = scalar_select %p160, %s14, 3
      %s162 = smul.addr %s161, 2
      %s163 = smul.addr %s162, 8
      %s164 = scalar_lea.vmem %s0, %s163
      %p165 = scmp.lt.s32.totalorder %s14, 3
      %s166 = scalar_select %p165, %s14, 3
      %s167 = smul.addr %s166, 8
      %s168 = scalar_lea.vmem %s3, %s167
      %v169 = vld [vmem:[%s164] sm:$0xff]
      %v170 = vld [vmem:[%s164 + $0x8] sm:$0xff]
      %v171 = vld [vmem:[%s1] sm:$0xff]
      %v172 = vld [vmem:[%s1 + $0x8] sm:$0xff]
      %v173 = vld [vmem:[%s1 + $0x10] sm:$0xff]
      %v174 = vld [vmem:[%s1 + $0x18] sm:$0xff]
      %v175 = vld [vmem:[%s1 + $0x20] sm:$0xff]
      %v176 = vld [vmem:[%s1 + $0x28] sm:$0xff]
      %v177 = vld [vmem:[%s1 + $0x30] sm:$0xff]
      %v178 = vld [vmem:[%s1 + $0x38] sm:$0xff]
      %v179 = vld [vmem:[%s1 + $0x40] sm:$0xff]
      %v180 = vld [vmem:[%s1 + $0x48] sm:$0xff]
      %v181 = vld [vmem:[%s1 + $0x50] sm:$0xff]
      %v182 = vld [vmem:[%s1 + $0x58] sm:$0xff]
      %v183 = vld [vmem:[%s1 + $0x60] sm:$0xff]
      %v184 = vld [vmem:[%s1 + $0x68] sm:$0xff]
      %v185 = vld [vmem:[%s1 + $0x70] sm:$0xff]
      %v186 = vld [vmem:[%s1 + $0x78] sm:$0xff]
      %v187 = vld [vmem:[%s1 + $0x80] sm:$0xff]
      %v188 = vld [vmem:[%s1 + $0x88] sm:$0xff]
      %v189 = vld [vmem:[%s1 + $0x90] sm:$0xff]
      %v190 = vld [vmem:[%s1 + $0x98] sm:$0xff]
      %v191 = vld [vmem:[%s1 + $0xa0] sm:$0xff]
      %v192 = vld [vmem:[%s1 + $0xa8] sm:$0xff]
      %v193 = vld [vmem:[%s1 + $0xb0] sm:$0xff]
      %v194 = vld [vmem:[%s1 + $0xb8] sm:$0xff]
      %v195 = vld [vmem:[%s1 + $0xc0] sm:$0xff]
      %v196 = vld [vmem:[%s1 + $0xc8] sm:$0xff]
      %v197 = vld [vmem:[%s1 + $0xd0] sm:$0xff]
      %v198 = vld [vmem:[%s1 + $0xd8] sm:$0xff]
      %v199 = vld [vmem:[%s1 + $0xe0] sm:$0xff]
      %v200 = vld [vmem:[%s1 + $0xe8] sm:$0xff]
      %v201 = vld [vmem:[%s1 + $0xf0] sm:$0xff]
      %v202 = vld [vmem:[%s1 + $0xf8] sm:$0xff]
      %v203 = vld [vmem:[%s2] sm:$0x1]
      %v205 = vlaneseq
      %v206 = vshrl.u32 %v205, 7
      %v207 = vsub.s32 0, %v206
      %v208 = vrot.slane %v203, %v207
      %210 = vmatprep.subr.mxu0 0.0
      %211 = vmatpush1.msra.mxu0 %v186
      %212 = vmatprep.subr.mxu0 0.0
      %213 = vmatpush1.msra.mxu0 %v185
      %214 = vmatprep.subr.mxu0 0.0
      %215 = vmatpush1.msra.mxu0 %v184
      %216 = vmatprep.subr.mxu0 0.0
      %217 = vmatpush1.msra.mxu0 %v183
      %218 = vmatprep.subr.mxu0 0.0
      %219 = vmatpush1.msra.mxu0 %v182
      %220 = vmatprep.subr.mxu0 0.0
      %221 = vmatpush1.msra.mxu0 %v181
      %222 = vmatprep.subr.mxu0 0.0
      %223 = vmatpush1.msra.mxu0 %v180
      %224 = vmatprep.subr.mxu0 0.0
      %225 = vmatpush1.msra.mxu0 %v179
      %226 = vmatprep.subr.mxu0 0.0
      %227 = vmatpush1.msra.mxu0 %v178
      %228 = vmatprep.subr.mxu0 0.0
      %229 = vmatpush1.msra.mxu0 %v177
      %230 = vmatprep.subr.mxu0 0.0
      %231 = vmatpush1.msra.mxu0 %v176
      %232 = vmatprep.subr.mxu0 0.0
      %233 = vmatpush1.msra.mxu0 %v175
      %234 = vmatprep.subr.mxu0 0.0
      %235 = vmatpush1.msra.mxu0 %v174
      %236 = vmatprep.subr.mxu0 0.0
      %237 = vmatpush1.msra.mxu0 %v173
      %238 = vmatprep.subr.mxu0 0.0
      %239 = vmatpush1.msra.mxu0 %v172
      %240 = vmatprep.subr.mxu0 0.0
      %241 = vmatpush1.msra.mxu0 %v171
      %242 = vmatprep.subr.mxu0 0.0
      %243 = vmatpush2.msra.mxu0 %v202
      %244 = vmatprep.subr.mxu0 0.0
      %245 = vmatpush2.msra.mxu0 %v201
      %246 = vmatprep.subr.mxu0 0.0
      %247 = vmatpush2.msra.mxu0 %v200
      %248 = vmatprep.subr.mxu0 0.0
      %249 = vmatpush2.msra.mxu0 %v199
      %250 = vmatprep.subr.mxu0 0.0
      %251 = vmatpush2.msra.mxu0 %v198
      %252 = vmatprep.subr.mxu0 0.0
      %253 = vmatpush2.msra.mxu0 %v197
      %254 = vmatprep.subr.mxu0 0.0
      %255 = vmatpush2.msra.mxu0 %v196
      %256 = vmatprep.subr.mxu0 0.0
      %257 = vmatpush2.msra.mxu0 %v195
      %258 = vmatprep.subr.mxu0 0.0
      %259 = vmatpush2.msra.mxu0 %v194
      %260 = vmatprep.subr.mxu0 0.0
      %261 = vmatpush2.msra.mxu0 %v193
      %262 = vmatprep.subr.mxu0 0.0
      %263 = vmatpush2.msra.mxu0 %v192
      %264 = vmatprep.subr.mxu0 0.0
      %265 = vmatpush2.msra.mxu0 %v191
      %266 = vmatprep.subr.mxu0 0.0
      %267 = vmatpush2.msra.mxu0 %v190
      %268 = vmatprep.subr.mxu0 0.0
      %269 = vmatpush2.msra.mxu0 %v189
      %270 = vmatprep.subr.mxu0 0.0
      %271 = vmatpush2.msra.mxu0 %v188
      %272 = vmatprep.subr.mxu0 0.0
      %273 = vmatpush2.msra.mxu0 %v187
      %274 = vmatprep.mubr.f32.mxu0 %v170
      %275 = vmatmul.mubr.f32.gmra.mxu0 %v169
      %v276 = vpop.f32.mrf.mxu0
      %v277 = vadd.f32 %v208, %v276
      %v278 = vpop.f32.mrf.mxu0
      %279 = vdwg.mxu0
      %vm280 = vcmask 195584
      %281 = vst.msk [vmem:[%s168] sm:$0xff] %vm280, %v277
      %p282 = scmp.lt.s32.totalorder %s14, 3
      %s283 = scalar_select %p282, %s14, 3
      %s284 = smul.addr %s283, 8
      %s285 = scalar_lea.vmem %s3, %s284
      // Predicated region
      $region33: #{tpu_custom_call.1} parent=31 // pred_check
        %p286 = pneg %p100
      $region34: #{tpu_custom_call.1} parent=31 // pred_check_branch
        %288 = sbr.rel (%p286) target = $region36
      $region35: #{tpu_custom_call.1} parent=31 // pred_region
        _
      $region36: #{tpu_custom_call.1} parent=31 // pred_fallthru
        _
    $region32: #{tpu_custom_call.1} parent=5 // pred_fallthru
      _
    %p289 = scmp.le.s32.totalorder 2, %s9
    // Predicated region
    $region37: #{tpu_custom_call.1} parent=5 // pred_check
      %p290 = pneg %p289
    $region38: #{tpu_custom_call.1} parent=5 // pred_check_branch
      %292 = sbr.rel (%p290) target = $region40
    $region39: #{tpu_custom_call.1} parent=5 // pred_region
      %s293 = ssub.s32 %s9, 2
      // Predicated region
      $region41: #{tpu_custom_call.1} parent=39 // pred_check
        %p294 = pneg %p106
      $region42: #{tpu_custom_call.1} parent=39 // pred_check_branch
        %296 = sbr.rel (%p294) target = $region44
      $region43: #{tpu_custom_call.1} parent=39 // pred_region
        %p297 = scmp.lt.s32.totalorder %s15, 3
        %s298 = scalar_select %p297, %s15, 3
        %s299 = smul.addr %s298, 8
        %s300 = scalar_lea.vmem %s3, %s299
      $region44: #{tpu_custom_call.1} parent=39 // pred_fallthru
        _
    $region40: #{tpu_custom_call.1} parent=5 // pred_fallthru
      _
  $region6: #{tpu_custom_call.1} parent=0 // loop_footer
    %s13 = sadd.s32 1, %s9
  $region7: #{tpu_custom_call.1} parent=0 // loop_footer_branch
    %8 = sbr.rel target = $region3
  $region8: #{tpu_custom_call.1} parent=0 // loop_exit
    _

</llo_original>
